<compile_context>
chip_gen: v7x
topology: tpu7x:2x2x1
jax: 0.10.0
libtpu: 0.0.40
codegen_flags: <defaults>
</compile_context>

<pallas_src>
import functools

import jax
import jax.numpy as jnp
from jax.experimental import pallas as pl
from jax.experimental.pallas import tpu as pltpu


def _round_up(x, m):
    return (x + m - 1) // m * m


def _vmem_limit_bytes():
    # v7x has 64 MiB physical VMEM per TensorCore; v5e/v6e have 128 MiB.
    try:
        kind = jax.devices()[0].device_kind.lower()
    except Exception:
        kind = ""
    return (48 if "v7" in kind else 64) * 1024 * 1024


_VMEM_LIMIT = _vmem_limit_bytes()


def _pick_tile(dim, pref, min_tile):
    """Largest power-of-two tile <= pref that divides dim (>= min_tile), else full dim."""
    t = pref
    while t >= min_tile:
        if dim % t == 0:
            return t
        t //= 2
    return dim


# ------------------------------ exact GELU -----------------------------------

_INV_SQRT2 = 0.7071067811865476


def _erf_approx(x):
    # Abramowitz & Stegun 7.1.26 rational approximation, |err| < 1.5e-7
    # (below bf16 output round-off). Uses only exp/mul/add/where (VPU/EUP ops).
    a1, a2, a3, a4, a5 = (0.254829592, -0.284496736, 1.421413741,
                          -1.453152027, 1.061405429)
    p = 0.3275911
    ax = jnp.abs(x)
    t = 1.0 / (1.0 + p * ax)
    poly = ((((a5 * t + a4) * t + a3) * t + a2) * t + a1) * t
    y = 1.0 - poly * jnp.exp(-ax * ax)
    return jnp.where(x < 0.0, -y, y)


def _gelu_exact(x):
    # erf-based GELU (nn.GELU default, approximate='none').
    return 0.5 * x * (1.0 + _erf_approx(x * _INV_SQRT2))


# --------------------------- tiled matmul kernel ------------------------------

def _matmul_kernel(*refs, nk, has_bias, has_res, activation):
    x_ref, w_ref = refs[0], refs[1]
    pos = 2
    b_ref = None
    r_ref = None
    if has_bias:
        b_ref = refs[pos]; pos += 1
    if has_res:
        r_ref = refs[pos]; pos += 1
    o_ref = refs[pos]
    acc_ref = refs[pos + 1]

    @pl.when(pl.program_id(2) == 0)
    def _():
        acc_ref[...] = jnp.zeros_like(acc_ref)

    acc_ref[...] += jnp.dot(x_ref[...], w_ref[...],
                            preferred_element_type=jnp.float32)

    @pl.when(pl.program_id(2) == nk - 1)
    def _():
        acc = acc_ref[...]
        if has_bias:
            acc = acc + b_ref[...].astype(jnp.float32)
        if activation == "gelu":
            acc = _gelu_exact(acc)
        if has_res:
            acc = acc + r_ref[...].astype(jnp.float32)
        o_ref[...] = acc.astype(o_ref.dtype)


def matmul(x, w, b=None, *, residual=None, activation=None,
           out_dtype=jnp.bfloat16, tm=256, tn=512, tk=512):
    """y = act(x @ w + b) (+ residual).  x:(M,K)  w:(K,N)  b:(N,)/(1,N).

    Rows (M) are zero-padded up to the chosen row tile so tiles stay bounded
    (no full-dimension fallback when M = B*257 etc.), and the result is sliced
    back to M rows.  K/N tiles fall back to the full dimension only when the
    dimension is small (legal full-dim blocks).
    """
    M, K = x.shape
    Kw, N = w.shape
    assert K == Kw
    tm = min(tm, _round_up(M, 8))
    Mp = _round_up(M, tm)
    if Mp != M:
        x = jnp.pad(x, ((0, Mp - M), (0, 0)))
        if residual is not None:
            residual = jnp.pad(residual, ((0, Mp - M), (0, 0)))
    tn = _pick_tile(N, tn, 128)
    tk = _pick_tile(K, tk, 128)
    nm, nn, nk = Mp // tm, N // tn, K // tk

    in_specs = [pl.BlockSpec((tm, tk), lambda i, j, k: (i, k)),
                pl.BlockSpec((tk, tn), lambda i, j, k: (k, j))]
    args = [x, w]
    if b is not None:
        in_specs.append(pl.BlockSpec((1, tn), lambda i, j, k: (0, j)))
        args.append(b.reshape(1, N))
    if residual is not None:
        in_specs.append(pl.BlockSpec((tm, tn), lambda i, j, k: (i, j)))
        args.append(residual)

    kernel = functools.partial(_matmul_kernel, nk=nk,
                               has_bias=b is not None,
                               has_res=residual is not None,
                               activation=activation)
    out = pl.pallas_call(
        kernel,
        out_shape=jax.ShapeDtypeStruct((Mp, N), out_dtype),
        grid=(nm, nn, nk),
        in_specs=in_specs,
        out_specs=pl.BlockSpec((tm, tn), lambda i, j, k: (i, j)),
        scratch_shapes=[pltpu.VMEM((tm, tn), jnp.float32)],
        compiler_params=pltpu.CompilerParams(
            dimension_semantics=("parallel", "parallel", "arbitrary"),
            vmem_limit_bytes=_VMEM_LIMIT),
    )(*args)
    if Mp != M:
        out = out[:M]
    return out


# ------------------------------ LayerNorm -------------------------------------

def _layernorm_kernel(x_ref, g_ref, b_ref, o_ref, *, eps):
    x = x_ref[...].astype(jnp.float32)
    mu = jnp.mean(x, axis=-1, keepdims=True)
    xc = x - mu
    var = jnp.mean(xc * xc, axis=-1, keepdims=True)
    xn = xc * jax.lax.rsqrt(var + eps)
    o_ref[...] = (xn * g_ref[...] + b_ref[...]).astype(o_ref.dtype)


def layernorm(x, g, b, eps=1e-6, out_dtype=jnp.bfloat16, tm=256):
    """Row-tiled LayerNorm; internal math in f32, output dtype selectable."""
    shp = x.shape
    D = shp[-1]
    x2 = x.reshape(-1, D)
    M = x2.shape[0]
    tmc = min(tm, _round_up(M, 8))
    Mp = _round_up(M, tmc)
    if Mp != M:
        x2 = jnp.pad(x2, ((0, Mp - M), (0, 0)))
    out = pl.pallas_call(
        functools.partial(_layernorm_kernel, eps=eps),
        out_shape=jax.ShapeDtypeStruct((Mp, D), out_dtype),
        grid=(Mp // tmc,),
        in_specs=[pl.BlockSpec((tmc, D), lambda i: (i, 0)),
                  pl.BlockSpec((1, D), lambda i: (0, 0)),
                  pl.BlockSpec((1, D), lambda i: (0, 0))],
        out_specs=pl.BlockSpec((tmc, D), lambda i: (i, 0)),
        compiler_params=pltpu.CompilerParams(
            dimension_semantics=("parallel",),
            vmem_limit_bytes=_VMEM_LIMIT),
    )(x2, g.reshape(1, D), b.reshape(1, D))
    if Mp != M:
        out = out[:M]
    return out.reshape(shp)


# -------------------------- fused softmax attention ---------------------------

def _attention_kernel(*refs, scale, has_bias_kv):
    if has_bias_kv:
        q_ref, k_ref, v_ref, bk_ref, bv_ref, o_ref = refs
    else:
        q_ref, k_ref, v_ref, o_ref = refs
        bk_ref = bv_ref = None

    q = q_ref[0]                                   # (L, hd) bf16
    k = k_ref[0]                                   # (L, hd)
    v = v_ref[0]                                   # (L, hd)
    s = jax.lax.dot_general(q, k, (((1,), (1,)), ((), ())),
                            preferred_element_type=jnp.float32) * scale  # (L, L)
    if has_bias_kv:
        # add_bias_kv: one extra (shared) key/value row handled in-kernel.
        bk = bk_ref[0].astype(jnp.float32)         # (1, hd)
        bv = bv_ref[0].astype(jnp.float32)         # (1, hd)
        sb = jnp.sum(q.astype(jnp.float32) * bk, axis=-1,
                     keepdims=True) * scale        # (L, 1)
        m = jnp.maximum(jnp.max(s, axis=-1, keepdims=True), sb)
        p = jnp.exp(s - m)
        pb = jnp.exp(sb - m)
        denom = jnp.sum(p, axis=-1, keepdims=True) + pb
        acc = jnp.dot(p.astype(v.dtype), v,
                      preferred_element_type=jnp.float32) + pb * bv
    else:
        m = jnp.max(s, axis=-1, keepdims=True)
        p = jnp.exp(s - m)
        denom = jnp.sum(p, axis=-1, keepdims=True)
        acc = jnp.dot(p.astype(v.dtype), v, preferred_element_type=jnp.float32)
    o_ref[0] = (acc * pl.reciprocal(denom, approx=True)).astype(o_ref.dtype)


def attention(qkv, num_heads, bias_k=None, bias_v=None):
    """Fused MHA core.  qkv:(B, L, 3D) packed [q|k|v]; returns (B, L, D) bf16.

    grid=(B, num_heads); each step sees lane-dense (L, hd) q/k/v blocks (the
    head-major layout is produced by one XLA transpose in the wrapper), so
    there are no unaligned in-kernel slices and both grid axes are parallel.
    """
    B, L, D3 = qkv.shape
    D = D3 // 3
    hd = D // num_heads
    has_bias_kv = bias_k is not None

    # (B, L, 3D) -> (3, B, H, L, hd) -> flat (3*B*H, L, hd)
    qkv_t = jnp.transpose(qkv.reshape(B, L, 3, num_heads, hd),
                          (2, 0, 3, 1, 4)).reshape(3 * B * num_heads, L, hd)

    H = num_heads
    q_spec = pl.BlockSpec((1, L, hd), lambda b, h: (b * H + h, 0, 0))
    k_spec = pl.BlockSpec((1, L, hd), lambda b, h: ((B + b) * H + h, 0, 0))
    v_spec = pl.BlockSpec((1, L, hd), lambda b, h: ((2 * B + b) * H + h, 0, 0))
    in_specs = [q_spec, k_spec, v_spec]
    args = [qkv_t, qkv_t, qkv_t]
    if has_bias_kv:
        bias_spec = pl.BlockSpec((1, 1, hd), lambda b, h: (h, 0, 0))
        in_specs += [bias_spec, bias_spec]
        args += [bias_k, bias_v]          # (H, 1, hd) each

    out = pl.pallas_call(
        functools.partial(_attention_kernel, scale=float(hd ** -0.5),
                          has_bias_kv=has_bias_kv),
        out_shape=jax.ShapeDtypeStruct((B * H, L, hd), jnp.bfloat16),
        grid=(B, H),
        in_specs=in_specs,
        out_specs=pl.BlockSpec((1, L, hd), lambda b, h: (b * H + h, 0, 0)),
        compiler_params=pltpu.CompilerParams(
            dimension_semantics=("parallel", "parallel"),
            vmem_limit_bytes=_VMEM_LIMIT),
    )(*args)
    # (B*H, L, hd) -> (B, L, D)
    return jnp.transpose(out.reshape(B, H, L, hd), (0, 2, 1, 3)).reshape(B, L, D)


# ---------------------------- L2 normalize + scale ----------------------------

def _l2norm_scale_kernel(x_ref, o_ref, *, scale, eps):
    x = x_ref[...].astype(jnp.float32)
    ssq = jnp.sum(x * x, axis=-1, keepdims=True)
    # F.normalize: x / max(||x||, eps)  ==  x * rsqrt(max(||x||^2, eps^2))
    inv = jax.lax.rsqrt(jnp.maximum(ssq, eps * eps))
    o_ref[...] = (x * inv * scale).astype(o_ref.dtype)


def l2_normalize_scale(x, scale):
    """F.normalize(dim=-1) followed by LearnableLogitScaling (fixed scale)."""
    return pl.pallas_call(
        functools.partial(_l2norm_scale_kernel, scale=float(scale), eps=1e-12),
        out_shape=jax.ShapeDtypeStruct(x.shape, jnp.float32),
    )(x)


# --------------------------- model building blocks ----------------------------

def patch_embed(x_nchw, w_patch_folded, patch_hw):
    """PadIm2Video(repeat,2) + Conv3d(kernel=stride=patch, no bias) + flatten.

    The temporal repeat is folded into the weight (summed over the kt taps),
    so only one (spatial) patch matmul is needed and the doubled input is
    never materialized.  The contraction dim is zero-padded to match the
    (128-aligned) pre-padded weight.
    """
    kh, kw = patch_hw
    B, C, H, W = x_nchw.shape
    Hp, Wp = H // kh, W // kw
    x = x_nchw.reshape(B, C, Hp, kh, Wp, kw)
    x = x.transpose(0, 2, 4, 1, 3, 5)                  # (B,Hp,Wp,C,kh,kw)
    patches = x.reshape(B * Hp * Wp, C * kh * kw).astype(jnp.bfloat16)
    K0 = patches.shape[1]
    Kw = w_patch_folded.shape[0]
    if Kw > K0:
        patches = jnp.pad(patches, ((0, 0), (0, Kw - K0)))
    tok = matmul(patches, w_patch_folded, out_dtype=jnp.float32)
    return tok.reshape(B, Hp * Wp, w_patch_folded.shape[1])


def transformer_block(x, p, num_heads):
    """BlockWithMasking (eval: DropPath = identity).  x: (B, L, D) bf16 residual stream."""
    B, L, D = x.shape
    x2 = x.reshape(B * L, D)
    # attention path: LN -> fused QKV matmul -> per-(batch,head) attention -> out-proj(+residual)
    h = layernorm(x, p['n1_g'], p['n1_b'])                              # bf16
    qkv = matmul(h.reshape(B * L, D), p['in_w'], p['in_b'])             # (BL, 3D) bf16
    a = attention(qkv.reshape(B, L, 3 * D), num_heads,
                  p.get('bias_k'), p.get('bias_v'))                     # (B, L, D) bf16
    x = matmul(a.reshape(B * L, D), p['out_w'], p['out_b'],
               residual=x2).reshape(B, L, D)                            # bf16
    # MLP path: LN -> linear + exact-GELU epilogue -> linear (+residual)
    x2 = x.reshape(B * L, D)
    h = layernorm(x, p['n2_g'], p['n2_b'])
    h1 = matmul(h.reshape(B * L, D), p['w1'], p['b1'], activation='gelu')  # (BL, 4D) bf16
    x = matmul(h1, p['w2'], p['b2'], residual=x2).reshape(B, L, D)
    return x


def modality_forward(x, mp, normalize=True):
    cfg = mp['cfg']
    kt, kh, kw = cfg['patch']
    # preprocessor: patch stem + cls token + learnable pos embed
    tok = patch_embed(x, mp['w_patch'], (kh, kw))                       # (B, Np, E) f32
    B, Np, E = tok.shape
    cls = jnp.broadcast_to(mp['cls_token'], (B, 1, E))
    x_bld = (jnp.concatenate([cls, tok], axis=1)
             + mp['pos_embed']).astype(jnp.bfloat16)                    # (B, L, E) bf16
    # trunk (kept in (B, L, D); 'b l d <-> l b d' rearranges are layout-only)
    if cfg['pre_ln']:
        x_bld = layernorm(x_bld, mp['pre_ln_g'], mp['pre_ln_b'])
    for blk in mp['blocks']:
        x_bld = transformer_block(x_bld, blk, cfg['num_heads'])
    # head: LayerNorm(eps=1e-6) -> SelectElement(0) -> Linear(no bias).
    # LN is per-token, so select the cls token first and LN only that row.
    cls_tok = x_bld[:, 0, :]                                            # (B, D) bf16
    h = layernorm(cls_tok, mp['head_ln_g'], mp['head_ln_b'])
    emb = matmul(h, mp['head_w'], out_dtype=jnp.float32)                # (B, out) f32
    if normalize:
        emb = l2_normalize_scale(emb, cfg['logit_scale'])               # Normalize [*scale]
    return emb


def imagebind_forward(inputs, params, normalize=True):
    """Mirrors ImageBindModel.forward (== ImageBindEmbedder.forward)."""
    outputs = {}
    for key, val in inputs.items():
        reduce_list = val.ndim >= 5
        if reduce_list:
            B0, S0 = val.shape[:2]
            val = val.reshape((B0 * S0,) + val.shape[2:])
        emb = modality_forward(val, params[key], normalize=normalize)
        if reduce_list:
            emb = emb.reshape(B0, S0, -1).mean(axis=1)
        outputs[key] = emb
    return outputs


# ------------------------------ parameter init --------------------------------

def init_block_params(key, D, add_bias_kv):
    ks = jax.random.split(key, 7)
    H = 4 * D
    std = 0.02
    return {
        'n1_g': jnp.ones((D,), jnp.float32), 'n1_b': jnp.zeros((D,), jnp.float32),
        'in_w': std * jax.random.normal(ks[0], (D, 3 * D), jnp.float32),
        'in_b': std * jax.random.normal(ks[1], (3 * D,), jnp.float32),
        'out_w': std * jax.random.normal(ks[2], (D, D), jnp.float32),
        'out_b': jnp.zeros((D,), jnp.float32),
        'n2_g': jnp.ones((D,), jnp.float32), 'n2_b': jnp.zeros((D,), jnp.float32),
        'w1': std * jax.random.normal(ks[3], (D, H), jnp.float32),
        'b1': jnp.zeros((H,), jnp.float32),
        'w2': std * jax.random.normal(ks[4], (H, D), jnp.float32),
        'b2': jnp.zeros((D,), jnp.float32),
        'bias_k': std * jax.random.normal(ks[5], (D,), jnp.float32) if add_bias_kv else None,
        'bias_v': std * jax.random.normal(ks[6], (D,), jnp.float32) if add_bias_kv else None,
    }


def init_modality_params(key, *, in_ch, img_hw, patch, embed_dim, num_heads,
                         num_blocks, out_dim, pre_ln, add_bias_kv, logit_scale):
    kt, kh, kw = patch
    n_patches = (2 // kt) * (img_hw // kh) * (img_hw // kw)
    ks = jax.random.split(key, 4 + num_blocks)
    std = 0.02
    mp = {
        'cfg': dict(patch=patch, num_heads=num_heads, pre_ln=pre_ln,
                    logit_scale=logit_scale, in_ch=in_ch),
        # Conv3d weight flattened as (C*kt*kh*kw, E) -- folded over kt in prep.
        'w_patch': std * jax.random.normal(
            ks[0], (in_ch * kt * kh * kw, embed_dim), jnp.float32),
        'cls_token': std * jax.random.normal(ks[1], (1, 1, embed_dim), jnp.float32),
        'pos_embed': std * jax.random.normal(
            ks[2], (1, 1 + n_patches, embed_dim), jnp.float32),
        'head_ln_g': jnp.ones((embed_dim,), jnp.float32),
        'head_ln_b': jnp.zeros((embed_dim,), jnp.float32),
        'head_w': std * jax.random.normal(ks[3], (embed_dim, out_dim), jnp.float32),
        'blocks': [init_block_params(ks[4 + i], embed_dim, add_bias_kv)
                   for i in range(num_blocks)],
    }
    if pre_ln:
        mp['pre_ln_g'] = jnp.ones((embed_dim,), jnp.float32)
        mp['pre_ln_b'] = jnp.zeros((embed_dim,), jnp.float32)
    return mp


def prepare_modality_params(mp):
    """One-time param prep: fold PadIm2Video repeat into the patch conv weight,
    pad its contraction dim to a multiple of 128, cast matmul weights to bf16,
    pre-shape biases (bias_kv stored head-major).  LN params stay f32."""
    cfg = mp['cfg']
    kt, kh, kw = cfg['patch']
    C = cfg['in_ch']
    E = mp['w_patch'].shape[1]
    H = cfg['num_heads']
    bf = jnp.bfloat16
    out = dict(mp)
    # Both repeated frames are identical and kt == T, so the Conv3d over time
    # reduces to a single spatial patch matmul with the kernel summed over kt.
    w_f = (mp['w_patch'].reshape(C, kt, kh, kw, E).sum(axis=1)
           .reshape(C * kh * kw, E))
    K0 = w_f.shape[0]
    if K0 > 128 and K0 % 128 != 0:
        w_f = jnp.pad(w_f, ((0, _round_up(K0, 128) - K0), (0, 0)))
    out['w_patch'] = w_f.astype(bf)
    out['head_w'] = mp['head_w'].astype(bf)
    blocks = []
    for p in mp['blocks']:
        q = dict(p)
        D = p['out_w'].shape[0]
        hd = D // H
        for name in ('in_w', 'out_w', 'w1', 'w2'):
            q[name] = p[name].astype(bf)
        for name in ('in_b', 'out_b', 'b1', 'b2'):
            q[name] = p[name].reshape(1, -1)            # f32, pre-shaped (1, N)
        if p.get('bias_k') is not None:
            q['bias_k'] = p['bias_k'].reshape(H, 1, hd).astype(bf)   # head-major
            q['bias_v'] = p['bias_v'].reshape(H, 1, hd).astype(bf)
        blocks.append(q)
    out['blocks'] = blocks
    return out


# ----------------------------------- main --------------------------------------

if __name__ == "__main__":
    key = jax.random.PRNGKey(0)
    k_in_v, k_in_t, k_pv, k_pt = jax.random.split(key, 4)

    # small config (full model: 1280/1024 dim, 32/24 blocks, 224x224, patch (2,14,14))
    B, IMG, PATCH = 2, 16, (2, 8, 8)
    EMB, HEADS, BLOCKS, OUT = 32, 4, 2, 16

    raw_params = {
        # vision trunk: pre_transformer LN, no bias_kv, postproc = Normalize only
        'vision': init_modality_params(
            k_pv, in_ch=3, img_hw=IMG, patch=PATCH, embed_dim=EMB,
            num_heads=HEADS, num_blocks=BLOCKS, out_dim=OUT,
            pre_ln=True, add_bias_kv=False, logit_scale=1.0),
        # touch trunk: no pre LN, add_bias_kv=True, postproc = Normalize * 5.0
        'touch': init_modality_params(
            k_pt, in_ch=3, img_hw=IMG, patch=PATCH, embed_dim=EMB,
            num_heads=HEADS, num_blocks=BLOCKS, out_dim=OUT,
            pre_ln=False, add_bias_kv=True, logit_scale=5.0),
    }
    params = {k: prepare_modality_params(v) for k, v in raw_params.items()}

    inputs = {
        'vision': jax.random.normal(k_in_v, (B, 3, IMG, IMG), jnp.float32),
        # 5-D touch input exercises the reduce_list (reshape + mean over clips) path
        'touch': jax.random.normal(k_in_t, (B, 2, 3, IMG, IMG), jnp.float32),
    }

    out = imagebind_forward(inputs, params)
    out = jax.block_until_ready(out)

    assert out['vision'].shape == (B, OUT) and out['touch'].shape == (B, OUT)
    print("KERNEL_OK")
</pallas_src>

<mosaic_0001>
module attributes {stable_mosaic.version = 11 : i64} {
  func.func @_matmul_kernel(%arg0: i32, %arg1: i32, %arg2: i32, %arg3: memref<8x256xbf16, #tpu.memory_space<vmem>>, %arg4: memref<256x32xbf16, #tpu.memory_space<vmem>>, %arg5: memref<8x32xf32, #tpu.memory_space<vmem>>, %arg6: memref<8x32xf32, #tpu.memory_space<vmem>>) attributes {dimension_semantics = [#tpu.dimension_semantics<parallel>, #tpu.dimension_semantics<parallel>, #tpu.dimension_semantics<arbitrary>], iteration_bounds = array<i64: 1, 1, 1>, scalar_prefetch = 0 : i64, scratch_operands = 1 : i64, tpu.core_type = #tpu.core_type<tc>, window_params = [{transform_indices = @transform_0, window_bounds = array<i64: 8, 256>}, {transform_indices = @transform_1, window_bounds = array<i64: 256, 32>}, {transform_indices = @transform_2, window_bounds = array<i64: 8, 32>}]} {
    %c0_i32 = arith.constant 0 : i32
    %0 = arith.cmpi eq, %arg2, %c0_i32 : i32
    %1 = arith.extui %0 : i1 to i32
    %c0_i32_0 = arith.constant 0 : i32
    %2 = arith.cmpi ne, %1, %c0_i32_0 : i32
    scf.if %2 {
      %cst_10 = arith.constant 0.000000e+00 : f32
      %12 = vector.broadcast %cst_10 : f32 to vector<8x32xf32>
      %c0_11 = arith.constant 0 : index
      %c0_12 = arith.constant 0 : index
      %13 = vector.load %arg6[%c0_11, %c0_12] : memref<8x32xf32, #tpu.memory_space<vmem>>, vector<8x32xf32>
      tpu.vector_store %arg6[%c0_11, %c0_12], %12 {strides = array<i32>} : memref<8x32xf32, #tpu.memory_space<vmem>>, vector<8x32xf32>,
    } else {
    }
    %c0 = arith.constant 0 : index
    %c0_1 = arith.constant 0 : index
    %3 = vector.load %arg6[%c0, %c0_1] : memref<8x32xf32, #tpu.memory_space<vmem>>, vector<8x32xf32>
    %c0_2 = arith.constant 0 : index
    %c0_3 = arith.constant 0 : index
    %4 = vector.load %arg3[%c0_2, %c0_3] : memref<8x256xbf16, #tpu.memory_space<vmem>>, vector<8x256xbf16>
    %c0_4 = arith.constant 0 : index
    %c0_5 = arith.constant 0 : index
    %5 = vector.load %arg4[%c0_4, %c0_5] : memref<256x32xbf16, #tpu.memory_space<vmem>>, vector<256x32xbf16>
    %cst = arith.constant dense<0.000000e+00> : vector<8x32xf32>
    %6 = tpu.matmul %4, %5, %cst {dimension_numbers = #tpu.dot_dimension_numbers<[1], [0], [0], [1], [0, 0, 1, 1], [], []>} : vector<8x256xbf16>, vector<256x32xbf16>, vector<8x32xf32> -> vector<8x32xf32>
    %7 = arith.addf %3, %6 : vector<8x32xf32>
    %c0_6 = arith.constant 0 : index
    %c0_7 = arith.constant 0 : index
    %8 = vector.load %arg6[%c0_6, %c0_7] : memref<8x32xf32, #tpu.memory_space<vmem>>, vector<8x32xf32>
    tpu.vector_store %arg6[%c0_6, %c0_7], %7 {strides = array<i32>} : memref<8x32xf32, #tpu.memory_space<vmem>>, vector<8x32xf32>,
    %c0_i32_8 = arith.constant 0 : i32
    %9 = arith.cmpi eq, %arg2, %c0_i32_8 : i32
    %10 = arith.extui %9 : i1 to i32
    %c0_i32_9 = arith.constant 0 : i32
    %11 = arith.cmpi ne, %10, %c0_i32_9 : i32
    scf.if %11 {
      %c0_10 = arith.constant 0 : index
      %c0_11 = arith.constant 0 : index
      %12 = vector.load %arg6[%c0_10, %c0_11] : memref<8x32xf32, #tpu.memory_space<vmem>>, vector<8x32xf32>
      %c0_12 = arith.constant 0 : index
      %c0_13 = arith.constant 0 : index
      %13 = vector.load %arg5[%c0_12, %c0_13] : memref<8x32xf32, #tpu.memory_space<vmem>>, vector<8x32xf32>
      tpu.vector_store %arg5[%c0_12, %c0_13], %12 {strides = array<i32>} : memref<8x32xf32, #tpu.memory_space<vmem>>, vector<8x32xf32>,
    } else {
    }
    return
  }
  func.func @transform_0(%arg0: i32, %arg1: i32, %arg2: i32) -> (i32, i32) {
    %c0_i32 = arith.constant 0 : i32
    return %arg0, %arg2 : i32, i32
  }
  func.func @transform_1(%arg0: i32, %arg1: i32, %arg2: i32) -> (i32, i32) {
    %c0_i32 = arith.constant 0 : i32
    return %arg2, %arg1 : i32, i32
  }
  func.func @transform_2(%arg0: i32, %arg1: i32, %arg2: i32) -> (i32, i32) {
    %c0_i32 = arith.constant 0 : i32
    return %arg0, %arg1 : i32, i32
  }
}

</mosaic_0001>

<llo_original>
// kernel: tpu_custom_call.1
$region0: #{tpu_custom_call.1}
  #allocation0 [shape = 'u32[]', space=smem, size = 0x4, offset = 0x4, fixed_abs, tag = 'smem constant byte address 0x4 - core index']
  #allocation1 [shape = 'u32[144,128]{1,0:T(1,128)}', space=vmem, size = 0x12000, scoped, tag = 'internal scratch']
  #allocation2 [shape = 'f32[8,32]{1,0:T(8,128)}', space=vmem, size = 0x1000, scoped, tag = 'scratch operand']
  %s0 = inlined_call_operand.hbm [shape: bf16[8,256], index: 0, kind: input, shape index: {}]
  %s1 = inlined_call_operand.hbm [shape: bf16[256,32], index: 1, kind: input, shape index: {}]
  %s2 = inlined_call_operand.hbm [shape: f32[8,32], index: 2, kind: output, shape index: {}]
  %s3 = sld [smem:[#allocation0]]
  $region34: #{tpu_custom_call.1} parent=0
    _
  %s5 = ssub.s32 1, %s3
  %s6 = scalar_select 0, %s5, %s3
  $region1: #{tpu_custom_call.1} parent=0
    #allocation3 [shape = 'u8[4096]{0}', space=vmem, size = 0x1000, scoped, tag = 'input window, operand 0, single buffered']
    #allocation4 [shape = 's32[1]{0}', space=sflag, size = 0x4, scoped, tag = 'scoped memory for tpu_custom_call.1']
    #allocation5 [shape = 's32[1]{0}', space=sflag, size = 0x4, scoped, tag = 'scoped memory for tpu_custom_call.1']
    #allocation6 [shape = 'u8[65536]{0}', space=vmem, size = 0x10000, scoped, tag = 'input window, operand 1, single buffered']
    #allocation7 [shape = 's32[1]{0}', space=sflag, size = 0x4, scoped, tag = 'scoped memory for tpu_custom_call.1']
    #allocation8 [shape = 'u8[4096]{0}', space=vmem, size = 0x1000, scoped, tag = 'output window, operand 0, single buffered']
    %7 = vsyncpa [#allocation4], 0
    %8 = vsyncpa [#allocation7], 0
    %9 = vsyncpa [#allocation5], 0
    // Predicated region
    $region2: #{tpu_custom_call.1} parent=1 // pred_check
      _
    $region3: #{tpu_custom_call.1} parent=1 // pred_check_branch
      %11 = sbr.rel (0) target = $region5
    $region4: #{tpu_custom_call.1} parent=1 // pred_region
      %s13 = ssub.s32 128, 128
      %14 = vsyncadd [#allocation4], %s13
      %s16 = sshll.u32 [#allocation3], 4
      %s17 = int_to_ptr.vmem [resolvable:$true] %s16
      %19 = dma.hbm_to_vmem [thread:$0]  %s0, 128, %s17, [#allocation4]
    $region5: #{tpu_custom_call.1} parent=1 // pred_fallthru
      _
    // Predicated region
    $region6: #{tpu_custom_call.1} parent=1 // pred_check
      _
    $region7: #{tpu_custom_call.1} parent=1 // pred_check_branch
      %21 = sbr.rel (0) target = $region9
    $region8: #{tpu_custom_call.1} parent=1 // pred_region
      %s23 = ssub.s32 2048, 2048
      %24 = vsyncadd [#allocation7], %s23
      %s25 = sshll.u32 [#allocation6], 4
      %s26 = int_to_ptr.vmem [resolvable:$true] %s25
      %31 = dma.hbm_to_vmem [thread:$0]  %s1, 2048, %s26, [#allocation7], 64, 64, 4
    $region9: #{tpu_custom_call.1} parent=1 // pred_fallthru
      _
    // Predicated region
    $region10: #{tpu_custom_call.1} parent=1 // pred_check
      _
    $region11: #{tpu_custom_call.1} parent=1 // pred_check_branch
      %33 = sbr.rel (0) target = $region13
    $region12: #{tpu_custom_call.1} parent=1 // pred_region
      %34 = dma.done [#allocation4], 128
    $region13: #{tpu_custom_call.1} parent=1 // pred_fallthru
      _
    // Predicated region
    $region14: #{tpu_custom_call.1} parent=1 // pred_check
      _
    $region15: #{tpu_custom_call.1} parent=1 // pred_check_branch
      %36 = sbr.rel (0) target = $region17
    $region16: #{tpu_custom_call.1} parent=1 // pred_region
      %37 = dma.done [#allocation7], 2048
    $region17: #{tpu_custom_call.1} parent=1 // pred_fallthru
      _
    %p39 = scmp.eq.s32.totalorder 0, 0
    // Predicated region
    $region18: #{tpu_custom_call.1} parent=1 // pred_check
      %p40 = pneg %p39
    $region19: #{tpu_custom_call.1} parent=1 // pred_check_branch
      %42 = sbr.rel (%p40) target = $region21
    $region20: #{tpu_custom_call.1} parent=1 // pred_region
      %vm43 = vcmask 261120
      %44 = vst.msk [vmem:[#allocation2] sm:$0xff] %vm43, 0.0
    $region21: #{tpu_custom_call.1} parent=1 // pred_fallthru
      _
    %v45 = vld [vmem:[#allocation2] sm:$0xff]
    %v46 = vld [vmem:[#allocation3] sm:$0xff]
    %v47 = vld [vmem:[#allocation6] sm:$0xf]
    %v48 = vld [vmem:[#allocation6 + $0x4] sm:$0xf]
    %v49 = vld [vmem:[#allocation6 + $0x8] sm:$0xf]
    %v50 = vld [vmem:[#allocation6 + $0xc] sm:$0xf]
    %v51 = vld [vmem:[#allocation6 + $0x10] sm:$0xf]
    %v52 = vld [vmem:[#allocation6 + $0x14] sm:$0xf]
    %v53 = vld [vmem:[#allocation6 + $0x18] sm:$0xf]
    %v54 = vld [vmem:[#allocation6 + $0x1c] sm:$0xf]
    %v55 = vld [vmem:[#allocation6 + $0x20] sm:$0xf]
    %v56 = vld [vmem:[#allocation6 + $0x24] sm:$0xf]
    %v57 = vld [vmem:[#allocation6 + $0x28] sm:$0xf]
    %v58 = vld [vmem:[#allocation6 + $0x2c] sm:$0xf]
    %v59 = vld [vmem:[#allocation6 + $0x30] sm:$0xf]
    %v60 = vld [vmem:[#allocation6 + $0x34] sm:$0xf]
    %v61 = vld [vmem:[#allocation6 + $0x38] sm:$0xf]
    %v62 = vld [vmem:[#allocation6 + $0x3c] sm:$0xf]
    %v63 = vld [vmem:[#allocation6 + $0x40] sm:$0xf]
    %v64 = vld [vmem:[#allocation6 + $0x44] sm:$0xf]
    %v65 = vld [vmem:[#allocation6 + $0x48] sm:$0xf]
    %v66 = vld [vmem:[#allocation6 + $0x4c] sm:$0xf]
    %v67 = vld [vmem:[#allocation6 + $0x50] sm:$0xf]
    %v68 = vld [vmem:[#allocation6 + $0x54] sm:$0xf]
    %v69 = vld [vmem:[#allocation6 + $0x58] sm:$0xf]
    %v70 = vld [vmem:[#allocation6 + $0x5c] sm:$0xf]
    %v71 = vld [vmem:[#allocation6 + $0x60] sm:$0xf]
    %v72 = vld [vmem:[#allocation6 + $0x64] sm:$0xf]
    %v73 = vld [vmem:[#allocation6 + $0x68] sm:$0xf]
    %v74 = vld [vmem:[#allocation6 + $0x6c] sm:$0xf]
    %v75 = vld [vmem:[#allocation6 + $0x70] sm:$0xf]
    %v76 = vld [vmem:[#allocation6 + $0x74] sm:$0xf]
    %v77 = vld [vmem:[#allocation6 + $0x78] sm:$0xf]
    %v78 = vld [vmem:[#allocation6 + $0x7c] sm:$0xf]
    %v80 = vunpack.c.l.b16 %v46
    %v81 = vunpack.c.h.b16 %v46
    %v82 = vpack.c.b16 %v80, %v80
    %v83 = vpack.c.b16 %v81, %v81
    %v118 = vunpack.c.l.b16 %v47
    %v119 = vunpack.c.l.b16 %v48
    %v120 = vunpack.c.l.b16 %v49
    %v121 = vunpack.c.l.b16 %v50
    %v122 = vunpack.c.l.b16 %v51
    %v123 = vunpack.c.l.b16 %v52
    %v124 = vunpack.c.l.b16 %v53
    %v125 = vunpack.c.l.b16 %v54
    %v126 = vunpack.c.l.b16 %v55
    %v127 = vunpack.c.l.b16 %v56
    %v128 = vunpack.c.l.b16 %v57
    %v129 = vunpack.c.l.b16 %v58
    %v130 = vunpack.c.l.b16 %v59
    %v131 = vunpack.c.l.b16 %v60
    %v132 = vunpack.c.l.b16 %v61
    %v133 = vunpack.c.l.b16 %v62
    %v134 = vunpack.c.l.b16 %v63
    %v135 = vunpack.c.l.b16 %v64
    %v136 = vunpack.c.l.b16 %v65
    %v137 = vunpack.c.l.b16 %v66
    %v138 = vunpack.c.l.b16 %v67
    %v139 = vunpack.c.l.b16 %v68
    %v140 = vunpack.c.l.b16 %v69
    %v141 = vunpack.c.l.b16 %v70
    %v142 = vunpack.c.l.b16 %v71
    %v143 = vunpack.c.l.b16 %v72
    %v144 = vunpack.c.l.b16 %v73
    %v145 = vunpack.c.l.b16 %v74
    %v146 = vunpack.c.l.b16 %v75
    %v147 = vunpack.c.l.b16 %v76
    %v148 = vunpack.c.l.b16 %v77
    %v149 = vunpack.c.l.b16 %v78
    %v150 = vpack.c.b16 %v119, %v118
    %v151 = vpack.c.b16 %v121, %v120
    %v152 = vpack.c.b16 %v123, %v122
    %v153 = vpack.c.b16 %v125, %v124
    %v154 = vpack.c.b16 %v127, %v126
    %v155 = vpack.c.b16 %v129, %v128
    %v156 = vpack.c.b16 %v131, %v130
    %v157 = vpack.c.b16 %v133, %v132
    %v158 = vpack.c.b16 %v135, %v134
    %v159 = vpack.c.b16 %v137, %v136
    %v160 = vpack.c.b16 %v139, %v138
    %v161 = vpack.c.b16 %v141, %v140
    %v162 = vpack.c.b16 %v143, %v142
    %v163 = vpack.c.b16 %v145, %v144
    %v164 = vpack.c.b16 %v147, %v146
    %v165 = vpack.c.b16 %v149, %v148
    %182 = vmatprep.subr.bf16.mxu0 0
    %183 = vmatpush1.bf16.msra.mxu0 %v150
    %184 = vmatprep.subr.bf16.mxu0 0
    %185 = vmatpush1.bf16.msra.mxu0 %v151
    %186 = vmatprep.subr.bf16.mxu0 0
    %187 = vmatpush1.bf16.msra.mxu0 %v152
    %188 = vmatprep.subr.bf16.mxu0 0
    %189 = vmatpush1.bf16.msra.mxu0 %v153
    %190 = vmatprep.subr.bf16.mxu0 0
    %191 = vmatpush1.bf16.msra.mxu0 %v154
    %192 = vmatprep.subr.bf16.mxu0 0
    %193 = vmatpush1.bf16.msra.mxu0 %v155
    %194 = vmatprep.subr.bf16.mxu0 0
    %195 = vmatpush1.bf16.msra.mxu0 %v156
    %196 = vmatprep.subr.bf16.mxu0 0
    %197 = vmatpush1.bf16.msra.mxu0 %v157
    %198 = vmatprep.subr.bf16.mxu0 0
    %199 = vmatpush1.bf16.msra.mxu0 %v158
    %200 = vmatprep.subr.bf16.mxu0 0
    %201 = vmatpush1.bf16.msra.mxu0 %v159
    %202 = vmatprep.subr.bf16.mxu0 0
    %203 = vmatpush1.bf16.msra.mxu0 %v160
    %204 = vmatprep.subr.bf16.mxu0 0
    %205 = vmatpush1.bf16.msra.mxu0 %v161
    %206 = vmatprep.subr.bf16.mxu0 0
    %207 = vmatpush1.bf16.msra.mxu0 %v162
    %208 = vmatprep.subr.bf16.mxu0 0
    %209 = vmatpush1.bf16.msra.mxu0 %v163
    %210 = vmatprep.subr.bf16.mxu0 0
    %211 = vmatpush1.bf16.msra.mxu0 %v164
    %212 = vmatprep.subr.bf16.mxu0 0
    %213 = vmatpush1.bf16.msra.mxu0 %v165
    %214 = vmatprep.mubr.bf16.mxu0 %v83
    %215 = vmatmul.mubr.bf16.gmra.mrb[0].mxu0 %v82
    %v216 = vpop.f32.mrb[0].mxu0
    %v217 = vadd.f32 0.0, %v216
    %v218 = vpop.f32.mrb[0].mxu0
    %v219 = vpop.f32.mrb[0].mxu0
    %v220 = vpop.f32.mrb[0].mxu0
    %221 = vdwg.mxu0
    %v222 = vadd.f32 %v45, %v217
    %vm223 = vcmask 261120
    %224 = vst.msk [vmem:[#allocation2] sm:$0xff] %vm223, %v222
    // Predicated region
    $region22: #{tpu_custom_call.1} parent=1 // pred_check
      %p225 = pneg %p39
    $region23: #{tpu_custom_call.1} parent=1 // pred_check_branch
      %227 = sbr.rel (%p225) target = $region25
    $region24: #{tpu_custom_call.1} parent=1 // pred_region
      %v228 = vld [vmem:[#allocation2] sm:$0xff]
      %229 = vst.msk [vmem:[#allocation8] sm:$0xff] %vm223, %v228
    $region25: #{tpu_custom_call.1} parent=1 // pred_fallthru
      _
    // Predicated region
    $region26: #{tpu_custom_call.1} parent=1 // pred_check
      _
    $region27: #{tpu_custom_call.1} parent=1 // pred_check_branch
      %231 = sbr.rel (0) target = $region29
    $region28: #{tpu_custom_call.1} parent=1 // pred_region
      %s233 = ssub.s32 128, 128
      %234 = vsyncadd [#allocation5], %s233
      %s236 = sshll.u32 [#allocation8], 4
      %s237 = int_to_ptr.vmem [resolvable:$true] %s236
      %239 = dma.vmem_to_hbm [thread:$0]  %s237, 128, %s2, [#allocation5]
    $region29: #{tpu_custom_call.1} parent=1 // pred_fallthru
      _
    // Predicated region
    $region30: #{tpu_custom_call.1} parent=1 // pred_check
      _
    $region31: #{tpu_custom_call.1} parent=1 // pred_check_branch
      %241 = sbr.rel (0) target = $region33
    $region32: #{tpu_custom_call.1} parent=1 // pred_region
      %242 = dma.done [#allocation5], 128
    $region33: #{tpu_custom_call.1} parent=1 // pred_fallthru
      _
    %243 = vsyncpa [#allocation4], 1
    %244 = vsyncpa [#allocation7], 1
    %245 = vsyncpa [#allocation5], 1

</llo_original>
